<compile_context>
chip_gen: v7x
topology: tpu7x:2x2x1
jax: 0.10.0
libtpu: 0.0.40
codegen_flags: <defaults>
</compile_context>

<pallas_src>
import jax
import jax.numpy as jnp
from jax.experimental import pallas as pl
from jax.experimental.pallas import tpu as pltpu


# ----------------------------- kernel helpers ------------------------------

def _layer_norm(h, gamma, beta, eps=1e-5):
    # Two-pass statistics (exactly the PyTorch LayerNorm formula).
    mu = jnp.mean(h, axis=-1, keepdims=True)
    d = h - mu
    var = jnp.mean(d * d, axis=-1, keepdims=True)
    return d * jax.lax.rsqrt(var + eps) * gamma + beta


def _sigmoid(z):
    # Stable sigmoid: exp(-|z|) never overflows; exp lands in the EUP slot.
    e = jnp.exp(-jnp.abs(z))
    return jnp.where(z >= 0, 1.0, e) / (1.0 + e)


def mlp_kernel(x_ref,
               w1_ref, b1_ref, g1_ref, be1_ref,
               w2_ref, b2_ref, g2_ref, be2_ref,
               wf_ref, bf_ref,
               o_ref):
    mxu_dtype = w1_ref.dtype          # bf16 or f32 (weights pre-cast once)

    # Cast the streamed f32 x to the MXU dtype in-kernel (free under the DMA).
    x = x_ref[...].astype(mxu_dtype)

    # hidden layer 1: Linear -> LayerNorm -> ReLU (f32 accumulate/elementwise)
    h = jnp.dot(x, w1_ref[...], preferred_element_type=jnp.float32)
    h = h + b1_ref[...]
    h = jnp.maximum(_layer_norm(h, g1_ref[...], be1_ref[...]), 0.0)

    # hidden layer 2: Linear -> LayerNorm -> ReLU
    # (on the bf16 path the intermediate activations are quantized to bf16
    #  before the next matmul; covered by the looser tolerance below)
    h = jnp.dot(h.astype(mxu_dtype), w2_ref[...],
                preferred_element_type=jnp.float32)
    h = h + b2_ref[...]
    h = jnp.maximum(_layer_norm(h, g2_ref[...], be2_ref[...]), 0.0)

    # final layer: Linear -> Sigmoid
    out = jnp.dot(h.astype(mxu_dtype), wf_ref[...],
                  preferred_element_type=jnp.float32)
    out = out + bf_ref[...]
    o_ref[...] = _sigmoid(out).astype(o_ref.dtype)


# ------------------------------ host wrapper -------------------------------

def _round_up(n, m):
    return ((n + m - 1) // m) * m


def _num_tensorcores():
    """Best-effort TensorCores-per-device (megacore / dual-TC detection)."""
    try:
        kind = jax.devices()[0].device_kind.lower()
    except Exception:
        return 1
    if any(s in kind for s in ("lite", "v5e", "v6e", "v6", "v2", "v3")):
        return 1                      # single TensorCore per device
    if any(s in kind for s in ("v4", "v5p", "v5", "7")):
        return 2                      # megacore (v4/v5p) or 2 TC/chip (v7x)
    return 1


def _default_tile_b(B, row_mult=8, cap=8192):
    # Big tiles amortize the ~0.35 us per-grid-step overhead; weights (~9 KB)
    # and even 8K-row activation tiles stay far below every generation's
    # scoped VMEM limit (incl. v7x's 64 MiB), so no VMEM-motivated cap.
    if _num_tensorcores() > 1:
        # dual-TC: aim for ~4 steps so each core keeps >=2 steps to pipeline.
        tile = _round_up(pl.cdiv(max(B, row_mult), 4), row_mult)
    else:
        # single TC: one big tile when it fits (no pure-overhead extra step).
        tile = _round_up(max(B, row_mult), row_mult)
    return max(row_mult, min(tile, cap))


def _build_call(B, D, H1, H2, F, tile_b, x_itemsize, w_itemsize, out_dtype,
                single_buffer_weights):
    if single_buffer_weights:
        # Grid-invariant operands: no second buffer / redundant prefetch work.
        def full(shape):
            return pl.BlockSpec(shape, lambda i: (0, 0),
                                pipeline_mode=pl.Buffered(1))
    else:
        def full(shape):
            return pl.BlockSpec(shape, lambda i: (0, 0))

    grid = pl.cdiv(B, tile_b)
    grid_spec = pltpu.PrefetchScalarGridSpec(
        num_scalar_prefetch=0,
        grid=(grid,),
        in_specs=[
            pl.BlockSpec((tile_b, D), lambda i: (i, 0)),   # x, streamed (f32)
            full((D, H1)), full((1, H1)), full((1, H1)), full((1, H1)),
            full((H1, H2)), full((1, H2)), full((1, H2)), full((1, H2)),
            full((H2, F)), full((1, F)),
        ],
        out_specs=pl.BlockSpec((tile_b, F), lambda i: (i, 0)),
    )

    out_itemsize = jnp.dtype(out_dtype).itemsize
    cost = pl.CostEstimate(
        flops=int(2 * B * (D * H1 + H1 * H2 + H2 * F)),
        transcendentals=int(B * F),
        bytes_accessed=int(B * (D * x_itemsize + F * out_itemsize)
                           + (D * H1 + H1 * H2 + H2 * F) * w_itemsize
                           + (3 * H1 + 3 * H2 + F) * 4),
    )

    return pl.pallas_call(
        mlp_kernel,
        out_shape=jax.ShapeDtypeStruct((B, F), out_dtype),
        grid_spec=grid_spec,
        cost_estimate=cost,
        compiler_params=pltpu.CompilerParams(
            dimension_semantics=("parallel",)),
    )


def prepare_params(params, use_bf16=True):
    """Pre-cast the weight matrices to the MXU dtype ONCE, outside the hot
    path.  Biases / LayerNorm params stay f32 (all elementwise math is f32)."""
    if not use_bf16:
        return params
    p = dict(params)
    for k in ("w1", "w2", "wf"):
        p[k] = params[k].astype(jnp.bfloat16)
    return p


def mlp_forward(x, params, *, tile_b=None, out_dtype=jnp.float32):
    """x: [B, D] float32.  Returns the sigmoid MLP output [B, F] in out_dtype.

    The MXU dtype follows the dtype of the weight matrices in `params`
    (use prepare_params(params, use_bf16=True) once to enable bf16 matmuls
    with f32 accumulation).
    """
    B, D = x.shape
    H1 = params["w1"].shape[1]
    H2 = params["w2"].shape[1]
    F = params["wf"].shape[1]

    if tile_b is None:
        tile_b = _default_tile_b(B)
    # Row tile: multiple of 8 (f32 sublane packing), never bigger than needed.
    tile_b = max(8, _round_up(min(tile_b, _round_up(max(B, 8), 8)), 8))

    # No jnp.pad for ragged batches: Pallas masks the partial final block
    # (out-of-range output rows are dropped; padded-row math cannot fault),
    # so a ragged B costs no extra pass over x in HBM.
    args = (
        x,
        params["w1"], params["b1"], params["g1"], params["be1"],
        params["w2"], params["b2"], params["g2"], params["be2"],
        params["wf"], params["bf"],
    )

    x_itemsize = jnp.dtype(x.dtype).itemsize
    w_itemsize = jnp.dtype(params["w1"].dtype).itemsize
    try:
        call = _build_call(B, D, H1, H2, F, tile_b, x_itemsize, w_itemsize,
                           out_dtype, True)
    except TypeError:
        # Older jax without pipeline_mode= on BlockSpec; only that specific
        # construction error falls back (genuine lowering errors surface).
        call = _build_call(B, D, H1, H2, F, tile_b, x_itemsize, w_itemsize,
                           out_dtype, False)
    return call(*args)


# ------------------------------ reference ----------------------------------

def _layer_norm_ref(h, gamma, beta, eps=1e-5):
    mu = jnp.mean(h, axis=-1, keepdims=True)
    var = jnp.mean((h - mu) * (h - mu), axis=-1, keepdims=True)
    return (h - mu) * jax.lax.rsqrt(var + eps) * gamma + beta


def mlp_reference(x, params):
    """Pure-JAX reference (same math as the PyTorch module, f32 throughout)."""
    h = x @ params["w1"] + params["b1"]
    h = jnp.maximum(_layer_norm_ref(h, params["g1"], params["be1"]), 0.0)
    h = h @ params["w2"] + params["b2"]
    h = jnp.maximum(_layer_norm_ref(h, params["g2"], params["be2"]), 0.0)
    out = h @ params["wf"] + params["bf"]
    return jax.nn.sigmoid(out)


def init_params(key, input_size=32, h1=64, h2=32, final_size=16):
    k1, k2, k3 = jax.random.split(key, 3)
    # Linear weights ~ N(0, 1/fan_in); biases filled with 0.0 (as in module).
    # LayerNorm: gamma=1, beta=0 (PyTorch defaults).  Weights stored [in, out].
    return {
        "w1": jax.random.normal(k1, (input_size, h1), jnp.float32) / jnp.sqrt(input_size),
        "b1": jnp.zeros((1, h1), jnp.float32),
        "g1": jnp.ones((1, h1), jnp.float32),
        "be1": jnp.zeros((1, h1), jnp.float32),
        "w2": jax.random.normal(k2, (h1, h2), jnp.float32) / jnp.sqrt(h1),
        "b2": jnp.zeros((1, h2), jnp.float32),
        "g2": jnp.ones((1, h2), jnp.float32),
        "be2": jnp.zeros((1, h2), jnp.float32),
        "wf": jax.random.normal(k3, (h2, final_size), jnp.float32) / jnp.sqrt(h2),
        "bf": jnp.zeros((1, final_size), jnp.float32),
    }


if __name__ == "__main__":
    key = jax.random.PRNGKey(0)
    kx, kp = jax.random.split(key)

    B, D = 16, 32
    x = jax.random.normal(kx, (B, D), jnp.float32)
    params = init_params(kp, input_size=D, h1=64, h2=32, final_size=16)

    ref = mlp_reference(x, params)

    # f32 weights (tight tolerance)
    out_f32 = jax.block_until_ready(mlp_forward(x, params))
    assert out_f32.shape == (B, 16)
    assert jnp.allclose(out_f32, ref, atol=1e-4, rtol=1e-4), "f32 mismatch"

    # bf16 matmuls (f32 accumulation / elementwise); weights pre-cast ONCE
    params_bf16 = prepare_params(params, use_bf16=True)
    out_bf16 = jax.block_until_ready(mlp_forward(x, params_bf16))
    assert out_bf16.shape == (B, 16)
    assert jnp.allclose(out_bf16, ref, atol=3e-2), "bf16 mismatch"

    # bf16 output stream (halves output HBM traffic on this mem-bound kernel)
    out_obf = jax.block_until_ready(
        mlp_forward(x, params, out_dtype=jnp.bfloat16))
    assert out_obf.dtype == jnp.bfloat16
    assert jnp.allclose(out_obf.astype(jnp.float32), ref, atol=1e-2), \
        "bf16-output mismatch"

    # ragged batch: no wrapper-side jnp.pad, Pallas masks the partial block
    xr = jax.random.normal(kx, (13, D), jnp.float32)
    out_r = jax.block_until_ready(mlp_forward(xr, params))
    assert out_r.shape == (13, 16)
    assert jnp.allclose(out_r, mlp_reference(xr, params), atol=1e-4, rtol=1e-4), \
        "ragged-batch mismatch"

    # multi-step grid with a ragged final block
    xm = jax.random.normal(kx, (200, D), jnp.float32)
    out_m = jax.block_until_ready(mlp_forward(xm, params, tile_b=64))
    assert out_m.shape == (200, 16)
    assert jnp.allclose(out_m, mlp_reference(xm, params), atol=1e-4, rtol=1e-4), \
        "multi-step grid mismatch"

    print("KERNEL_OK")
</pallas_src>

<mosaic_0001>
module attributes {stable_mosaic.version = 11 : i64} {
  func.func @mlp_kernel(%arg0: i32, %arg1: memref<16x32xf32, #tpu.memory_space<vmem>>, %arg2: memref<32x64xf32, #tpu.memory_space<vmem>>, %arg3: memref<1x64xf32, #tpu.memory_space<vmem>>, %arg4: memref<1x64xf32, #tpu.memory_space<vmem>>, %arg5: memref<1x64xf32, #tpu.memory_space<vmem>>, %arg6: memref<64x32xf32, #tpu.memory_space<vmem>>, %arg7: memref<1x32xf32, #tpu.memory_space<vmem>>, %arg8: memref<1x32xf32, #tpu.memory_space<vmem>>, %arg9: memref<1x32xf32, #tpu.memory_space<vmem>>, %arg10: memref<32x16xf32, #tpu.memory_space<vmem>>, %arg11: memref<1x16xf32, #tpu.memory_space<vmem>>, %arg12: memref<16x16xf32, #tpu.memory_space<vmem>>) attributes {dimension_semantics = [#tpu.dimension_semantics<parallel>], iteration_bounds = array<i64: 1>, scalar_prefetch = 0 : i64, scratch_operands = 0 : i64, tpu.core_type = #tpu.core_type<tc>, window_params = [{transform_indices = @transform_0, window_bounds = array<i64: 16, 32>}, {pipeline_mode = #tpu.pipeline_mode<synchronous>, transform_indices = @transform_1, window_bounds = array<i64: 32, 64>}, {pipeline_mode = #tpu.pipeline_mode<synchronous>, transform_indices = @transform_2, window_bounds = array<i64: 1, 64>}, {pipeline_mode = #tpu.pipeline_mode<synchronous>, transform_indices = @transform_3, window_bounds = array<i64: 1, 64>}, {pipeline_mode = #tpu.pipeline_mode<synchronous>, transform_indices = @transform_4, window_bounds = array<i64: 1, 64>}, {pipeline_mode = #tpu.pipeline_mode<synchronous>, transform_indices = @transform_5, window_bounds = array<i64: 64, 32>}, {pipeline_mode = #tpu.pipeline_mode<synchronous>, transform_indices = @transform_6, window_bounds = array<i64: 1, 32>}, {pipeline_mode = #tpu.pipeline_mode<synchronous>, transform_indices = @transform_7, window_bounds = array<i64: 1, 32>}, {pipeline_mode = #tpu.pipeline_mode<synchronous>, transform_indices = @transform_8, window_bounds = array<i64: 1, 32>}, {pipeline_mode = #tpu.pipeline_mode<synchronous>, transform_indices = @transform_9, window_bounds = array<i64: 32, 16>}, {pipeline_mode = #tpu.pipeline_mode<synchronous>, transform_indices = @transform_10, window_bounds = array<i64: 1, 16>}, {transform_indices = @transform_11, window_bounds = array<i64: 16, 16>}]} {
    %c0 = arith.constant 0 : index
    %c0_0 = arith.constant 0 : index
    %0 = vector.load %arg1[%c0, %c0_0] : memref<16x32xf32, #tpu.memory_space<vmem>>, vector<16x32xf32>
    %c0_1 = arith.constant 0 : index
    %c0_2 = arith.constant 0 : index
    %1 = vector.load %arg2[%c0_1, %c0_2] : memref<32x64xf32, #tpu.memory_space<vmem>>, vector<32x64xf32>
    %cst = arith.constant dense<0.000000e+00> : vector<16x64xf32>
    %2 = tpu.matmul %0, %1, %cst {dimension_numbers = #tpu.dot_dimension_numbers<[1], [0], [0], [1], [0, 0, 1, 1], [], []>} : vector<16x32xf32>, vector<32x64xf32>, vector<16x64xf32> -> vector<16x64xf32>
    %c0_3 = arith.constant 0 : index
    %c0_4 = arith.constant 0 : index
    %3 = vector.load %arg3[%c0_3, %c0_4] : memref<1x64xf32, #tpu.memory_space<vmem>>, vector<1x64xf32>
    %4 = vector.broadcast %3 : vector<1x64xf32> to vector<16x64xf32>
    %5 = arith.addf %2, %4 : vector<16x64xf32>
    %c0_5 = arith.constant 0 : index
    %c0_6 = arith.constant 0 : index
    %6 = vector.load %arg4[%c0_5, %c0_6] : memref<1x64xf32, #tpu.memory_space<vmem>>, vector<1x64xf32>
    %c0_7 = arith.constant 0 : index
    %c0_8 = arith.constant 0 : index
    %7 = vector.load %arg5[%c0_7, %c0_8] : memref<1x64xf32, #tpu.memory_space<vmem>>, vector<1x64xf32>
    %cst_9 = arith.constant dense<0.000000e+00> : vector<16xf32>
    %8 = vector.multi_reduction <add>, %5, %cst_9 [1] : vector<16x64xf32> to vector<16xf32>
    %9 = vector.shape_cast %8 : vector<16xf32> to vector<16x1xf32>
    %cst_10 = arith.constant 6.400000e+01 : f32
    %10 = vector.broadcast %cst_10 : f32 to vector<16x1xf32>
    %11 = arith.divf %9, %10 : vector<16x1xf32>
    %12 = vector.broadcast %11 : vector<16x1xf32> to vector<16x64xf32>
    %13 = arith.subf %5, %12 : vector<16x64xf32>
    %14 = arith.mulf %13, %13 : vector<16x64xf32>
    %cst_11 = arith.constant dense<0.000000e+00> : vector<16xf32>
    %15 = vector.multi_reduction <add>, %14, %cst_11 [1] : vector<16x64xf32> to vector<16xf32>
    %16 = vector.shape_cast %15 : vector<16xf32> to vector<16x1xf32>
    %cst_12 = arith.constant 6.400000e+01 : f32
    %17 = vector.broadcast %cst_12 : f32 to vector<16x1xf32>
    %18 = arith.divf %16, %17 : vector<16x1xf32>
    %cst_13 = arith.constant 9.99999974E-6 : f32
    %19 = vector.broadcast %cst_13 : f32 to vector<16x1xf32>
    %20 = arith.addf %18, %19 : vector<16x1xf32>
    %21 = math.rsqrt %20 : vector<16x1xf32>
    %22 = vector.broadcast %21 : vector<16x1xf32> to vector<16x64xf32>
    %23 = arith.mulf %13, %22 : vector<16x64xf32>
    %24 = vector.broadcast %6 : vector<1x64xf32> to vector<16x64xf32>
    %25 = arith.mulf %23, %24 : vector<16x64xf32>
    %26 = vector.broadcast %7 : vector<1x64xf32> to vector<16x64xf32>
    %27 = arith.addf %25, %26 : vector<16x64xf32>
    %cst_14 = arith.constant 0.000000e+00 : f32
    %28 = vector.broadcast %cst_14 : f32 to vector<16x64xf32>
    %29 = arith.maximumf %27, %28 : vector<16x64xf32>
    %c0_15 = arith.constant 0 : index
    %c0_16 = arith.constant 0 : index
    %30 = vector.load %arg6[%c0_15, %c0_16] : memref<64x32xf32, #tpu.memory_space<vmem>>, vector<64x32xf32>
    %cst_17 = arith.constant dense<0.000000e+00> : vector<16x32xf32>
    %31 = tpu.matmul %29, %30, %cst_17 {dimension_numbers = #tpu.dot_dimension_numbers<[1], [0], [0], [1], [0, 0, 1, 1], [], []>} : vector<16x64xf32>, vector<64x32xf32>, vector<16x32xf32> -> vector<16x32xf32>
    %c0_18 = arith.constant 0 : index
    %c0_19 = arith.constant 0 : index
    %32 = vector.load %arg7[%c0_18, %c0_19] : memref<1x32xf32, #tpu.memory_space<vmem>>, vector<1x32xf32>
    %33 = vector.broadcast %32 : vector<1x32xf32> to vector<16x32xf32>
    %34 = arith.addf %31, %33 : vector<16x32xf32>
    %c0_20 = arith.constant 0 : index
    %c0_21 = arith.constant 0 : index
    %35 = vector.load %arg8[%c0_20, %c0_21] : memref<1x32xf32, #tpu.memory_space<vmem>>, vector<1x32xf32>
    %c0_22 = arith.constant 0 : index
    %c0_23 = arith.constant 0 : index
    %36 = vector.load %arg9[%c0_22, %c0_23] : memref<1x32xf32, #tpu.memory_space<vmem>>, vector<1x32xf32>
    %cst_24 = arith.constant dense<0.000000e+00> : vector<16xf32>
    %37 = vector.multi_reduction <add>, %34, %cst_24 [1] : vector<16x32xf32> to vector<16xf32>
    %38 = vector.shape_cast %37 : vector<16xf32> to vector<16x1xf32>
    %cst_25 = arith.constant 3.200000e+01 : f32
    %39 = vector.broadcast %cst_25 : f32 to vector<16x1xf32>
    %40 = arith.divf %38, %39 : vector<16x1xf32>
    %41 = vector.broadcast %40 : vector<16x1xf32> to vector<16x32xf32>
    %42 = arith.subf %34, %41 : vector<16x32xf32>
    %43 = arith.mulf %42, %42 : vector<16x32xf32>
    %cst_26 = arith.constant dense<0.000000e+00> : vector<16xf32>
    %44 = vector.multi_reduction <add>, %43, %cst_26 [1] : vector<16x32xf32> to vector<16xf32>
    %45 = vector.shape_cast %44 : vector<16xf32> to vector<16x1xf32>
    %cst_27 = arith.constant 3.200000e+01 : f32
    %46 = vector.broadcast %cst_27 : f32 to vector<16x1xf32>
    %47 = arith.divf %45, %46 : vector<16x1xf32>
    %cst_28 = arith.constant 9.99999974E-6 : f32
    %48 = vector.broadcast %cst_28 : f32 to vector<16x1xf32>
    %49 = arith.addf %47, %48 : vector<16x1xf32>
    %50 = math.rsqrt %49 : vector<16x1xf32>
    %51 = vector.broadcast %50 : vector<16x1xf32> to vector<16x32xf32>
    %52 = arith.mulf %42, %51 : vector<16x32xf32>
    %53 = vector.broadcast %35 : vector<1x32xf32> to vector<16x32xf32>
    %54 = arith.mulf %52, %53 : vector<16x32xf32>
    %55 = vector.broadcast %36 : vector<1x32xf32> to vector<16x32xf32>
    %56 = arith.addf %54, %55 : vector<16x32xf32>
    %cst_29 = arith.constant 0.000000e+00 : f32
    %57 = vector.broadcast %cst_29 : f32 to vector<16x32xf32>
    %58 = arith.maximumf %56, %57 : vector<16x32xf32>
    %c0_30 = arith.constant 0 : index
    %c0_31 = arith.constant 0 : index
    %59 = vector.load %arg10[%c0_30, %c0_31] : memref<32x16xf32, #tpu.memory_space<vmem>>, vector<32x16xf32>
    %cst_32 = arith.constant dense<0.000000e+00> : vector<16x16xf32>
    %60 = tpu.matmul %58, %59, %cst_32 {dimension_numbers = #tpu.dot_dimension_numbers<[1], [0], [0], [1], [0, 0, 1, 1], [], []>} : vector<16x32xf32>, vector<32x16xf32>, vector<16x16xf32> -> vector<16x16xf32>
    %c0_33 = arith.constant 0 : index
    %c0_34 = arith.constant 0 : index
    %61 = vector.load %arg11[%c0_33, %c0_34] : memref<1x16xf32, #tpu.memory_space<vmem>>, vector<1x16xf32>
    %62 = vector.broadcast %61 : vector<1x16xf32> to vector<16x16xf32>
    %63 = arith.addf %60, %62 : vector<16x16xf32>
    %64 = math.absf %63 : vector<16x16xf32>
    %cst_35 = arith.constant 0.000000e+00 : f32
    %65 = vector.broadcast %cst_35 : f32 to vector<16x16xf32>
    %66 = arith.subf %65, %64 : vector<16x16xf32>
    %67 = math.exp %66 : vector<16x16xf32>
    %cst_36 = arith.constant 0.000000e+00 : f32
    %68 = vector.broadcast %cst_36 : f32 to vector<16x16xf32>
    %69 = arith.cmpf oge, %63, %68 : vector<16x16xf32>
    %cst_37 = arith.constant 1.000000e+00 : f32
    %70 = vector.broadcast %cst_37 : f32 to vector<16x16xf32>
    %71 = arith.select %69, %70, %67 : vector<16x16xi1>, vector<16x16xf32>
    %cst_38 = arith.constant 1.000000e+00 : f32
    %72 = vector.broadcast %cst_38 : f32 to vector<16x16xf32>
    %73 = arith.addf %72, %67 : vector<16x16xf32>
    %74 = arith.divf %71, %73 : vector<16x16xf32>
    %c0_39 = arith.constant 0 : index
    %c0_40 = arith.constant 0 : index
    %75 = vector.load %arg12[%c0_39, %c0_40] : memref<16x16xf32, #tpu.memory_space<vmem>>, vector<16x16xf32>
    tpu.vector_store %arg12[%c0_39, %c0_40], %74 {strides = array<i32>} : memref<16x16xf32, #tpu.memory_space<vmem>>, vector<16x16xf32>,
    return
  }
  func.func @transform_0(%arg0: i32) -> (i32, i32) {
    %c0_i32 = arith.constant 0 : i32
    %c0_i32_0 = arith.constant 0 : i32
    return %arg0, %c0_i32 : i32, i32
  }
  func.func @transform_1(%arg0: i32) -> (i32, i32) {
    %c0_i32 = arith.constant 0 : i32
    %c0_i32_0 = arith.constant 0 : i32
    %c0_i32_1 = arith.constant 0 : i32
    return %c0_i32, %c0_i32_0 : i32, i32
  }
  func.func @transform_2(%arg0: i32) -> (i32, i32) {
    %c0_i32 = arith.constant 0 : i32
    %c0_i32_0 = arith.constant 0 : i32
    %c0_i32_1 = arith.constant 0 : i32
    return %c0_i32, %c0_i32_0 : i32, i32
  }
  func.func @transform_3(%arg0: i32) -> (i32, i32) {
    %c0_i32 = arith.constant 0 : i32
    %c0_i32_0 = arith.constant 0 : i32
    %c0_i32_1 = arith.constant 0 : i32
    return %c0_i32, %c0_i32_0 : i32, i32
  }
  func.func @transform_4(%arg0: i32) -> (i32, i32) {
    %c0_i32 = arith.constant 0 : i32
    %c0_i32_0 = arith.constant 0 : i32
    %c0_i32_1 = arith.constant 0 : i32
    return %c0_i32, %c0_i32_0 : i32, i32
  }
  func.func @transform_5(%arg0: i32) -> (i32, i32) {
    %c0_i32 = arith.constant 0 : i32
    %c0_i32_0 = arith.constant 0 : i32
    %c0_i32_1 = arith.constant 0 : i32
    return %c0_i32, %c0_i32_0 : i32, i32
  }
  func.func @transform_6(%arg0: i32) -> (i32, i32) {
    %c0_i32 = arith.constant 0 : i32
    %c0_i32_0 = arith.constant 0 : i32
    %c0_i32_1 = arith.constant 0 : i32
    return %c0_i32, %c0_i32_0 : i32, i32
  }
  func.func @transform_7(%arg0: i32) -> (i32, i32) {
    %c0_i32 = arith.constant 0 : i32
    %c0_i32_0 = arith.constant 0 : i32
    %c0_i32_1 = arith.constant 0 : i32
    return %c0_i32, %c0_i32_0 : i32, i32
  }
  func.func @transform_8(%arg0: i32) -> (i32, i32) {
    %c0_i32 = arith.constant 0 : i32
    %c0_i32_0 = arith.constant 0 : i32
    %c0_i32_1 = arith.constant 0 : i32
    return %c0_i32, %c0_i32_0 : i32, i32
  }
  func.func @transform_9(%arg0: i32) -> (i32, i32) {
    %c0_i32 = arith.constant 0 : i32
    %c0_i32_0 = arith.constant 0 : i32
    %c0_i32_1 = arith.constant 0 : i32
    return %c0_i32, %c0_i32_0 : i32, i32
  }
  func.func @transform_10(%arg0: i32) -> (i32, i32) {
    %c0_i32 = arith.constant 0 : i32
    %c0_i32_0 = arith.constant 0 : i32
    %c0_i32_1 = arith.constant 0 : i32
    return %c0_i32, %c0_i32_0 : i32, i32
  }
  func.func @transform_11(%arg0: i32) -> (i32, i32) {
    %c0_i32 = arith.constant 0 : i32
    %c0_i32_0 = arith.constant 0 : i32
    return %arg0, %c0_i32 : i32, i32
  }
}

</mosaic_0001>

<llo_original>
// kernel: tpu_custom_call.1
$region0: #{tpu_custom_call.1}
  #allocation0 [shape = 'u32[]', space=smem, size = 0x4, offset = 0x4, fixed_abs, tag = 'smem constant byte address 0x4 - core index']
  #allocation1 [shape = 'u32[144,128]{1,0:T(1,128)}', space=vmem, size = 0x12000, scoped, tag = 'internal scratch']
  %s0 = inlined_call_operand.vmem [shape: f32[16,32], index: 0, kind: input, shape index: {}]
  %s1 = inlined_call_operand.vmem [shape: f32[32,64], index: 1, kind: input, shape index: {}]
  %s2 = inlined_call_operand.vmem [shape: f32[1,64], index: 2, kind: input, shape index: {}]
  %s3 = inlined_call_operand.vmem [shape: f32[1,64], index: 3, kind: input, shape index: {}]
  %s4 = inlined_call_operand.vmem [shape: f32[1,64], index: 4, kind: input, shape index: {}]
  %s5 = inlined_call_operand.vmem [shape: f32[64,32], index: 5, kind: input, shape index: {}]
  %s6 = inlined_call_operand.vmem [shape: f32[1,32], index: 6, kind: input, shape index: {}]
  %s7 = inlined_call_operand.vmem [shape: f32[1,32], index: 7, kind: input, shape index: {}]
  %s8 = inlined_call_operand.vmem [shape: f32[1,32], index: 8, kind: input, shape index: {}]
  %s9 = inlined_call_operand.vmem [shape: f32[32,16], index: 9, kind: input, shape index: {}]
  %s10 = inlined_call_operand.vmem [shape: f32[1,16], index: 10, kind: input, shape index: {}]
  %s11 = inlined_call_operand.hbm [shape: f32[16,16], index: 11, kind: output, shape index: {}]
  %s12 = sld [smem:[#allocation0]]
  $region54: #{tpu_custom_call.1} parent=0
    _
  %s14 = ssub.s32 1, %s12
  %s15 = scalar_select 0, %s14, %s12
  $region1: #{tpu_custom_call.1} parent=0
    #allocation2 [shape = 'u8[8192]{0}', space=vmem, size = 0x2000, scoped, tag = 'output window, operand 0, single buffered']
    #allocation3 [shape = 's32[1]{0}', space=sflag, size = 0x4, scoped, tag = 'scoped memory for tpu_custom_call.1']
    %16 = vsyncpa [#allocation3], 0
    // Predicated region
    $region2: #{tpu_custom_call.1} parent=1 // pred_check
      _
    $region3: #{tpu_custom_call.1} parent=1 // pred_check_branch
      %18 = sbr.rel (0) target = $region5
    $region4: #{tpu_custom_call.1} parent=1 // pred_region
      _
    $region5: #{tpu_custom_call.1} parent=1 // pred_fallthru
      _
    // Predicated region
    $region6: #{tpu_custom_call.1} parent=1 // pred_check
      _
    $region7: #{tpu_custom_call.1} parent=1 // pred_check_branch
      %20 = sbr.rel (0) target = $region9
    $region8: #{tpu_custom_call.1} parent=1 // pred_region
      _
    $region9: #{tpu_custom_call.1} parent=1 // pred_fallthru
      _
    // Predicated region
    $region10: #{tpu_custom_call.1} parent=1 // pred_check
      _
    $region11: #{tpu_custom_call.1} parent=1 // pred_check_branch
      %22 = sbr.rel (0) target = $region13
    $region12: #{tpu_custom_call.1} parent=1 // pred_region
      _
    $region13: #{tpu_custom_call.1} parent=1 // pred_fallthru
      _
    // Predicated region
    $region14: #{tpu_custom_call.1} parent=1 // pred_check
      _
    $region15: #{tpu_custom_call.1} parent=1 // pred_check_branch
      %24 = sbr.rel (0) target = $region17
    $region16: #{tpu_custom_call.1} parent=1 // pred_region
      _
    $region17: #{tpu_custom_call.1} parent=1 // pred_fallthru
      _
    // Predicated region
    $region18: #{tpu_custom_call.1} parent=1 // pred_check
      _
    $region19: #{tpu_custom_call.1} parent=1 // pred_check_branch
      %26 = sbr.rel (0) target = $region21
    $region20: #{tpu_custom_call.1} parent=1 // pred_region
      _
    $region21: #{tpu_custom_call.1} parent=1 // pred_fallthru
      _
    // Predicated region
    $region22: #{tpu_custom_call.1} parent=1 // pred_check
      _
    $region23: #{tpu_custom_call.1} parent=1 // pred_check_branch
      %28 = sbr.rel (0) target = $region25
    $region24: #{tpu_custom_call.1} parent=1 // pred_region
      _
    $region25: #{tpu_custom_call.1} parent=1 // pred_fallthru
      _
    // Predicated region
    $region26: #{tpu_custom_call.1} parent=1 // pred_check
      _
    $region27: #{tpu_custom_call.1} parent=1 // pred_check_branch
      %30 = sbr.rel (0) target = $region29
    $region28: #{tpu_custom_call.1} parent=1 // pred_region
      _
    $region29: #{tpu_custom_call.1} parent=1 // pred_fallthru
      _
    // Predicated region
    $region30: #{tpu_custom_call.1} parent=1 // pred_check
      _
    $region31: #{tpu_custom_call.1} parent=1 // pred_check_branch
      %32 = sbr.rel (0) target = $region33
    $region32: #{tpu_custom_call.1} parent=1 // pred_region
      _
    $region33: #{tpu_custom_call.1} parent=1 // pred_fallthru
      _
    // Predicated region
    $region34: #{tpu_custom_call.1} parent=1 // pred_check
      _
    $region35: #{tpu_custom_call.1} parent=1 // pred_check_branch
      %34 = sbr.rel (0) target = $region37
    $region36: #{tpu_custom_call.1} parent=1 // pred_region
      _
    $region37: #{tpu_custom_call.1} parent=1 // pred_fallthru
      _
    // Predicated region
    $region38: #{tpu_custom_call.1} parent=1 // pred_check
      _
    $region39: #{tpu_custom_call.1} parent=1 // pred_check_branch
      %36 = sbr.rel (0) target = $region41
    $region40: #{tpu_custom_call.1} parent=1 // pred_region
      _
    $region41: #{tpu_custom_call.1} parent=1 // pred_fallthru
      _
    // Predicated region
    $region42: #{tpu_custom_call.1} parent=1 // pred_check
      _
    $region43: #{tpu_custom_call.1} parent=1 // pred_check_branch
      %38 = sbr.rel (0) target = $region45
    $region44: #{tpu_custom_call.1} parent=1 // pred_region
      _
    $region45: #{tpu_custom_call.1} parent=1 // pred_fallthru
      _
    %v39 = vld [vmem:[%s0] sm:$0xff]
    %v40 = vld [vmem:[%s0 + $0x8] sm:$0xff]
    %v41 = vld [vmem:[%s1] sm:$0xff]
    %v42 = vld [vmem:[%s1 + $0x8] sm:$0xff]
    %v43 = vld [vmem:[%s1 + $0x10] sm:$0xff]
    %v44 = vld [vmem:[%s1 + $0x18] sm:$0xff]
    %v45 = vld [vmem:[%s2] sm:$0x1]
    %v47 = vlaneseq
    %v48 = vshrl.u32 %v47, 7
    %v49 = vsub.s32 0, %v48
    %v50 = vrot.slane %v45, %v49
    %vm52 = vcmask 261120
    %v54 = vsel %vm52, %v39, 0
    %v57 = vsel %vm52, %v40, 0
    %59 = vmatprep.subr.mxu0 0.0
    %60 = vmatpush1.msra.mxu0 %v41
    %61 = vmatprep.subr.mxu0 0.0
    %62 = vmatpush1.msra.mxu0 %v42
    %63 = vmatprep.subr.mxu0 0.0
    %64 = vmatpush1.msra.mxu0 %v43
    %65 = vmatprep.subr.mxu0 0.0
    %66 = vmatpush1.msra.mxu0 %v44
    %67 = vmatprep.subr.mxu0 0.0
    %68 = vmatpush1.msra.mxu0 0.0
    %69 = vmatprep.subr.mxu0 0.0
    %70 = vmatpush1.msra.mxu0 0.0
    %71 = vmatprep.subr.mxu0 0.0
    %72 = vmatpush1.msra.mxu0 0.0
    %73 = vmatprep.subr.mxu0 0.0
    %74 = vmatpush1.msra.mxu0 0.0
    %75 = vmatprep.subr.mxu0 0.0
    %76 = vmatpush1.msra.mxu0 0.0
    %77 = vmatprep.subr.mxu0 0.0
    %78 = vmatpush1.msra.mxu0 0.0
    %79 = vmatprep.subr.mxu0 0.0
    %80 = vmatpush1.msra.mxu0 0.0
    %81 = vmatprep.subr.mxu0 0.0
    %82 = vmatpush1.msra.mxu0 0.0
    %83 = vmatprep.subr.mxu0 0.0
    %84 = vmatpush1.msra.mxu0 0.0
    %85 = vmatprep.subr.mxu0 0.0
    %86 = vmatpush1.msra.mxu0 0.0
    %87 = vmatprep.subr.mxu0 0.0
    %88 = vmatpush1.msra.mxu0 0.0
    %89 = vmatprep.subr.mxu0 0.0
    %90 = vmatpush1.msra.mxu0 0.0
    %91 = vmatprep.subr.mxu0 0.0
    %92 = vmatpush1.msra.mxu0 0.0
    %93 = vmatprep.subr.mxu0 0.0
    %94 = vmatpush1.msra.mxu0 0.0
    %95 = vmatprep.subr.mxu0 0.0
    %96 = vmatpush1.msra.mxu0 0.0
    %97 = vmatprep.subr.mxu0 0.0
    %98 = vmatpush1.msra.mxu0 0.0
    %99 = vmatprep.subr.mxu0 0.0
    %100 = vmatpush1.msra.mxu0 0.0
    %101 = vmatprep.subr.mxu0 0.0
    %102 = vmatpush1.msra.mxu0 0.0
    %103 = vmatprep.subr.mxu0 0.0
    %104 = vmatpush1.msra.mxu0 0.0
    %105 = vmatprep.subr.mxu0 0.0
    %106 = vmatpush1.msra.mxu0 0.0
    %107 = vmatprep.subr.mxu0 0.0
    %108 = vmatpush1.msra.mxu0 0.0
    %109 = vmatprep.subr.mxu0 0.0
    %110 = vmatpush1.msra.mxu0 0.0
    %111 = vmatprep.subr.mxu0 0.0
    %112 = vmatpush1.msra.mxu0 0.0
    %113 = vmatprep.subr.mxu0 0.0
    %114 = vmatpush1.msra.mxu0 0.0
    %115 = vmatprep.subr.mxu0 0.0
    %116 = vmatpush1.msra.mxu0 0.0
    %117 = vmatprep.subr.mxu0 0.0
    %118 = vmatpush1.msra.mxu0 0.0
    %119 = vmatprep.subr.mxu0 0.0
    %120 = vmatpush1.msra.mxu0 0.0
    %121 = vmatprep.subr.mxu0 0.0
    %122 = vmatpush1.msra.mxu0 0.0
    %123 = vmatprep.mubr.f32.mxu0 0.0
    %124 = vmatmul.mubr.f32.gmra.mrb[0].mxu0 %v54
    %v125 = vpop.f32.mrb[0].mxu0
    %v126 = vadd.f32 %v50, %v125
    %v127 = vpop.f32.mrb[0].mxu0
    %128 = vmatprep.mubr.f32.mxu0 0.0
    %129 = vmatmul.mubr.f32.gmra.mrb[0].mxu0 %v57
    %v130 = vpop.f32.mrb[0].mxu0
    %v131 = vadd.f32 %v50, %v130
    %v132 = vpop.f32.mrb[0].mxu0
    %133 = vdwg.mxu0
    %v134 = vld [vmem:[%s3] sm:$0x1]
    %v135 = vld [vmem:[%s4] sm:$0x1]
    %vm136 = vcmask 523264
    %v137 = vsel %vm136, %v126, 0.0
    %138 = vadd.xlane.f32.xlu0 %v137
    %v139 = vpop.xlane.xlu0 %138
    %v140 = vsel %vm136, %v131, 0.0
    %141 = vadd.xlane.f32.xlu0 %v140
    %v142 = vpop.xlane.xlu0 %141
    %v143 = vrcp.pop 64.0
    %v144 = vmul.f32 %v139, %v143
    %v145 = vmul.f32 %v142, %v143
    %v146 = vsub.f32 %v126, %v144
    %v147 = vsub.f32 %v131, %v145
    %v148 = vmul.f32 %v146, %v146
    %v149 = vmul.f32 %v147, %v147
    %v150 = vsel %vm136, %v148, 0.0
    %151 = vadd.xlane.f32.xlu0 %v150
    %v152 = vpop.xlane.xlu0 %151
    %v153 = vsel %vm136, %v149, 0.0
    %154 = vadd.xlane.f32.xlu0 %v153
    %v155 = vpop.xlane.xlu0 %154
    %v156 = vmul.f32 %v152, %v143
    %v157 = vmul.f32 %v155, %v143
    %v158 = vadd.f32 %v156, 1e-05
    %v159 = vadd.f32 %v157, 1e-05
    %v160 = vrsqrt.pop %v158
    %v161 = vrsqrt.pop %v159
    %v162 = vmul.f32 %v146, %v160
    %v163 = vmul.f32 %v147, %v161
    %v165 = vlaneseq
    %v166 = vshrl.u32 %v165, 7
    %v167 = vsub.s32 0, %v166
    %v168 = vrot.slane %v134, %v167
    %v170 = vmul.f32 %v162, %v168
    %v171 = vmul.f32 %v163, %v168
    %v173 = vlaneseq
    %v174 = vshrl.u32 %v173, 7
    %v175 = vsub.s32 0, %v174
    %v176 = vrot.slane %v135, %v175
    %v178 = vadd.f32 %v170, %v176
    %v179 = vadd.f32 %v171, %v176
    %v180 = vmax.f32 %v178, 0.0
    %v181 = vmax.f32 %v179, 0.0
    %v182 = vld [vmem:[%s5] sm:$0xff]
    %v183 = vld [vmem:[%s5 + $0x8] sm:$0xff]
    %v184 = vld [vmem:[%s5 + $0x10] sm:$0xff]
    %v185 = vld [vmem:[%s5 + $0x18] sm:$0xff]
    %v186 = vld [vmem:[%s5 + $0x20] sm:$0xff]
    %v187 = vld [vmem:[%s5 + $0x28] sm:$0xff]
    %v188 = vld [vmem:[%s5 + $0x30] sm:$0xff]
    %v189 = vld [vmem:[%s5 + $0x38] sm:$0xff]
    %v190 = vld [vmem:[%s6] sm:$0x1]
    %v192 = vlaneseq
    %v193 = vshrl.u32 %v192, 7
    %v194 = vsub.s32 0, %v193
    %v195 = vrot.slane %v190, %v194
    %v198 = vsel %vm136, %v180, 0
    %v201 = vsel %vm136, %v181, 0
    %203 = vmatprep.subr.mxu0 0.0
    %204 = vmatpush1.msra.mxu0 %v182
    %205 = vmatprep.subr.mxu0 0.0
    %206 = vmatpush1.msra.mxu0 %v183
    %207 = vmatprep.subr.mxu0 0.0
    %208 = vmatpush1.msra.mxu0 %v184
    %209 = vmatprep.subr.mxu0 0.0
    %210 = vmatpush1.msra.mxu0 %v185
    %211 = vmatprep.subr.mxu0 0.0
    %212 = vmatpush1.msra.mxu0 %v186
    %213 = vmatprep.subr.mxu0 0.0
    %214 = vmatpush1.msra.mxu0 %v187
    %215 = vmatprep.subr.mxu0 0.0
    %216 = vmatpush1.msra.mxu0 %v188
    %217 = vmatprep.subr.mxu0 0.0
    %218 = vmatpush1.msra.mxu0 %v189
    %219 = vmatprep.subr.mxu0 0.0
    %220 = vmatpush1.msra.mxu0 0.0
    %221 = vmatprep.subr.mxu0 0.0
    %222 = vmatpush1.msra.mxu0 0.0
    %223 = vmatprep.subr.mxu0 0.0
    %224 = vmatpush1.msra.mxu0 0.0
    %225 = vmatprep.subr.mxu0 0.0
    %226 = vmatpush1.msra.mxu0 0.0
    %227 = vmatprep.subr.mxu0 0.0
    %228 = vmatpush1.msra.mxu0 0.0
    %229 = vmatprep.subr.mxu0 0.0
    %230 = vmatpush1.msra.mxu0 0.0
    %231 = vmatprep.subr.mxu0 0.0
    %232 = vmatpush1.msra.mxu0 0.0
    %233 = vmatprep.subr.mxu0 0.0
    %234 = vmatpush1.msra.mxu0 0.0
    %235 = vmatprep.subr.mxu0 0.0
    %236 = vmatpush1.msra.mxu0 0.0
    %237 = vmatprep.subr.mxu0 0.0
    %238 = vmatpush1.msra.mxu0 0.0
    %239 = vmatprep.subr.mxu0 0.0
    %240 = vmatpush1.msra.mxu0 0.0
    %241 = vmatprep.subr.mxu0 0.0
    %242 = vmatpush1.msra.mxu0 0.0
    %243 = vmatprep.subr.mxu0 0.0
    %244 = vmatpush1.msra.mxu0 0.0
    %245 = vmatprep.subr.mxu0 0.0
    %246 = vmatpush1.msra.mxu0 0.0
    %247 = vmatprep.subr.mxu0 0.0
    %248 = vmatpush1.msra.mxu0 0.0
    %249 = vmatprep.subr.mxu0 0.0
    %250 = vmatpush1.msra.mxu0 0.0
    %251 = vmatprep.subr.mxu0 0.0
    %252 = vmatpush1.msra.mxu0 0.0
    %253 = vmatprep.subr.mxu0 0.0
    %254 = vmatpush1.msra.mxu0 0.0
    %255 = vmatprep.subr.mxu0 0.0
    %256 = vmatpush1.msra.mxu0 0.0
    %257 = vmatprep.subr.mxu0 0.0
    %258 = vmatpush1.msra.mxu0 0.0
    %259 = vmatprep.subr.mxu0 0.0
    %260 = vmatpush1.msra.mxu0 0.0
    %261 = vmatprep.subr.mxu0 0.0
    %262 = vmatpush1.msra.mxu0 0.0
    %263 = vmatprep.subr.mxu0 0.0
    %264 = vmatpush1.msra.mxu0 0.0
    %265 = vmatprep.subr.mxu0 0.0
    %266 = vmatpush1.msra.mxu0 0.0
    %267 = vmatprep.mubr.f32.mxu0 0.0
    %268 = vmatmul.mubr.f32.gmra.mrb[0].mxu0 %v198
    %v269 = vpop.f32.mrb[0].mxu0
    %v270 = vadd.f32 %v195, %v269
    %v271 = vpop.f32.mrb[0].mxu0
    %272 = vmatprep.mubr.f32.mxu0 0.0
    %273 = vmatmul.mubr.f32.gmra.mrb[0].mxu0 %v201
    %v274 = vpop.f32.mrb[0].mxu0
    %v275 = vadd.f32 %v195, %v274
    %v276 = vpop.f32.mrb[0].mxu0
    %277 = vdwg.mxu0
    %v278 = vld [vmem:[%s7] sm:$0x1]
    %v279 = vld [vmem:[%s8] sm:$0x1]
    %v280 = vsel %vm52, %v270, 0.0
    %281 = vadd.xlane.f32.xlu0 %v280
    %v282 = vpop.xlane.xlu0 %281
    %v283 = vsel %vm52, %v275, 0.0
    %284 = vadd.xlane.f32.xlu0 %v283
    %v285 = vpop.xlane.xlu0 %284
    %v286 = vrcp.pop 32.0
    %v287 = vmul.f32 %v282, %v286
    %v288 = vmul.f32 %v285, %v286
    %v289 = vsub.f32 %v270, %v287
    %v290 = vsub.f32 %v275, %v288
    %v291 = vmul.f32 %v289, %v289
    %v292 = vmul.f32 %v290, %v290
    %v293 = vsel %vm52, %v291, 0.0
    %294 = vadd.xlane.f32.xlu0 %v293
    %v295 = vpop.xlane.xlu0 %294
    %v296 = vsel %vm52, %v292, 0.0
    %297 = vadd.xlane.f32.xlu0 %v296
    %v298 = vpop.xlane.xlu0 %297
    %v299 = vmul.f32 %v295, %v286
    %v300 = vmul.f32 %v298, %v286
    %v301 = vadd.f32 %v299, 1e-05
    %v302 = vadd.f32 %v300, 1e-05
    %v303 = vrsqrt.pop %v301
    %v304 = vrsqrt.pop %v302
    %v305 = vmul.f32 %v289, %v303
    %v306 = vmul.f32 %v290, %v304
    %v308 = vlaneseq
    %v309 = vshrl.u32 %v308, 7
    %v310 = vsub.s32 0, %v309
    %v311 = vrot.slane %v278, %v310
    %v313 = vmul.f32 %v305, %v311
    %v314 = vmul.f32 %v306, %v311
    %v316 = vlaneseq
    %v317 = vshrl.u32 %v316, 7
    %v318 = vsub.s32 0, %v317
    %v319 = vrot.slane %v279, %v318
    %v321 = vadd.f32 %v313, %v319
    %v322 = vadd.f32 %v314, %v319
    %v323 = vmax.f32 %v321, 0.0
    %v324 = vmax.f32 %v322, 0.0
    %v325 = vld [vmem:[%s9] sm:$0xff]
    %v326 = vld [vmem:[%s9 + $0x8] sm:$0xff]
    %v327 = vld [vmem:[%s9 + $0x10] sm:$0xff]
    %v328 = vld [vmem:[%s9 + $0x18] sm:$0xff]
    %v329 = vld [vmem:[%s10] sm:$0x1]
    %v331 = vlaneseq
    %v332 = vshrl.u32 %v331, 7
    %v333 = vsub.s32 0, %v332
    %v334 = vrot.slane %v329, %v333
    %v337 = vsel %vm52, %v323, 0
    %v340 = vsel %vm52, %v324, 0
    %342 = vmatprep.subr.mxu0 0.0
    %343 = vmatpush1.msra.mxu0 %v325
    %344 = vmatprep.subr.mxu0 0.0
    %345 = vmatpush1.msra.mxu0 %v326
    %346 = vmatprep.subr.mxu0 0.0
    %347 = vmatpush1.msra.mxu0 %v327
    %348 = vmatprep.subr.mxu0 0.0
    %349 = vmatpush1.msra.mxu0 %v328
    %350 = vmatprep.subr.mxu0 0.0
    %351 = vmatpush1.msra.mxu0 0.0
    %352 = vmatprep.subr.mxu0 0.0
    %353 = vmatpush1.msra.mxu0 0.0
    %354 = vmatprep.subr.mxu0 0.0
    %355 = vmatpush1.msra.mxu0 0.0
    %356 = vmatprep.subr.mxu0 0.0
    %357 = vmatpush1.msra.mxu0 0.0
    %358 = vmatprep.subr.mxu0 0.0
    %359 = vmatpush1.msra.mxu0 0.0
    %360 = vmatprep.subr.mxu0 0.0
    %361 = vmatpush1.msra.mxu0 0.0
    %362 = vmatprep.subr.mxu0 0.0
    %363 = vmatpush1.msra.mxu0 0.0
    %364 = vmatprep.subr.mxu0 0.0
    %365 = vmatpush1.msra.mxu0 0.0
    %366 = vmatprep.subr.mxu0 0.0
    %367 = vmatpush1.msra.mxu0 0.0
    %368 = vmatprep.subr.mxu0 0.0
    %369 = vmatpush1.msra.mxu0 0.0
    %370 = vmatprep.subr.mxu0 0.0
    %371 = vmatpush1.msra.mxu0 0.0
    %372 = vmatprep.subr.mxu0 0.0
    %373 = vmatpush1.msra.mxu0 0.0
    %374 = vmatprep.subr.mxu0 0.0
    %375 = vmatpush1.msra.mxu0 0.0
    %376 = vmatprep.subr.mxu0 0.0
    %377 = vmatpush1.msra.mxu0 0.0
    %378 = vmatprep.subr.mxu0 0.0
    %379 = vmatpush1.msra.mxu0 0.0
    %380 = vmatprep.subr.mxu0 0.0
    %381 = vmatpush1.msra.mxu0 0.0
    %382 = vmatprep.subr.mxu0 0.0
    %383 = vmatpush1.msra.mxu0 0.0
    %384 = vmatprep.subr.mxu0 0.0
    %385 = vmatpush1.msra.mxu0 0.0
    %386 = vmatprep.subr.mxu0 0.0
    %387 = vmatpush1.msra.mxu0 0.0
    %388 = vmatprep.subr.mxu0 0.0
    %389 = vmatpush1.msra.mxu0 0.0
    %390 = vmatprep.subr.mxu0 0.0
    %391 = vmatpush1.msra.mxu0 0.0
    %392 = vmatprep.subr.mxu0 0.0
    %393 = vmatpush1.msra.mxu0 0.0
    %394 = vmatprep.subr.mxu0 0.0
    %395 = vmatpush1.msra.mxu0 0.0
    %396 = vmatprep.subr.mxu0 0.0
    %397 = vmatpush1.msra.mxu0 0.0
    %398 = vmatprep.subr.mxu0 0.0
    %399 = vmatpush1.msra.mxu0 0.0
    %400 = vmatprep.subr.mxu0 0.0
    %401 = vmatpush1.msra.mxu0 0.0
    %402 = vmatprep.subr.mxu0 0.0
    %403 = vmatpush1.msra.mxu0 0.0
    %404 = vmatprep.subr.mxu0 0.0
    %405 = vmatpush1.msra.mxu0 0.0
    %406 = vmatprep.mubr.f32.mxu0 0.0
    %407 = vmatmul.mubr.f32.gmra.mrb[0].mxu0 %v337
    %v408 = vpop.f32.mrb[0].mxu0
    %v409 = vadd.f32 %v334, %v408
    %v410 = vpop.f32.mrb[0].mxu0
    %411 = vmatprep.mubr.f32.mxu0 0.0
    %412 = vmatmul.mubr.f32.gmra.mrb[0].mxu0 %v340
    %v413 = vpop.f32.mrb[0].mxu0
    %v414 = vadd.f32 %v334, %v413
    %v415 = vpop.f32.mrb[0].mxu0
    %416 = vdwg.mxu0
    %v417 = vand.u32 2147483647, %v409
    %v418 = vand.u32 2147483647, %v414
    %v419 = vsub.f32 0.0, %v417
    %v420 = vsub.f32 0.0, %v418
    %v421 = vmul.f32 %v419, 1.442695
    %v422 = vpow.pop %v421
    %v423 = vmul.f32 %v420, 1.442695
    %v424 = vpow.pop %v423
    %vm425 = vcmp.ge.f32.partialorder %v409, 0.0
    %vm426 = vcmp.ge.f32.partialorder %v414, 0.0
    %v427 = vsel %vm425, 1.0, %v422
    %v428 = vsel %vm426, 1.0, %v424
    %v429 = vadd.f32 %v422, 1.0
    %v430 = vadd.f32 %v424, 1.0
    %v431 = vrcp.pop %v429
    %v432 = vmul.f32 %v427, %v431
    %v433 = vrcp.pop %v430
    %v434 = vmul.f32 %v428, %v433
    %vm435 = vcmask 130048
    %436 = vst.msk [vmem:[#allocation2] sm:$0xff] %vm435, %v432
    %437 = vst.msk [vmem:[#allocation2 + $0x8] sm:$0xff] %vm435, %v434
    // Predicated region
    $region46: #{tpu_custom_call.1} parent=1 // pred_check
      _
    $region47: #{tpu_custom_call.1} parent=1 // pred_check_branch
      %439 = sbr.rel (0) target = $region49
    $region48: #{tpu_custom_call.1} parent=1 // pred_region
      %s441 = ssub.s32 256, 256
      %442 = vsyncadd [#allocation3], %s441
      %s443 = sshll.u32 [#allocation2], 4
      %s444 = int_to_ptr.vmem [resolvable:$true] %s443
      %449 = dma.vmem_to_hbm [thread:$0]  %s444, 256, %s11, [#allocation3], 128, 128, 8
    $region49: #{tpu_custom_call.1} parent=1 // pred_fallthru
      _
    // Predicated region
    $region50: #{tpu_custom_call.1} parent=1 // pred_check
      _
    $region51: #{tpu_custom_call.1} parent=1 // pred_check_branch
      %451 = sbr.rel (0) target = $region53
    $region52: #{tpu_custom_call.1} parent=1 // pred_region
      %452 = dma.done [#allocation3], 256
    $region53: #{tpu_custom_call.1} parent=1 // pred_fallthru
      _
    %453 = vsyncpa [#allocation3], 1

</llo_original>
